<compile_context>
chip_gen: v6e
topology: v6e:2x2x1
jax: 0.10.0
libtpu: 0.0.40
codegen_flags: <defaults>
</compile_context>

<pallas_src>
import math

import jax
import jax.numpy as jnp
from jax.experimental import pallas as pl
from jax.experimental.pallas import tpu as pltpu


_LANE = 128
_VMEM_BUDGET = 40 * 1024 * 1024      # per-step working-set target (v7x-safe)
_VMEM_LIMIT = 48 * 1024 * 1024       # scoped VMEM request


def _round_up(x, m):
    return ((x + m - 1) // m) * m


def _sublane(dtype):
    return 8 if jnp.dtype(dtype).itemsize >= 4 else 16


def _make_kernel(*, kernel_size, dilation, seg_len, halo, tile_lanes,
                 has_downsample, has_halo, compute_dtype):
    k, d = kernel_size, dilation

    def shift(v, s, pos):
        # Causal shift along lanes: out[:, p] = v[:, p - s] if pos[p] >= s else 0.
        if s == 0:
            return v
        if s >= seg_len:                       # every causal input out of range
            return jnp.zeros_like(v)
        rolled = pltpu.roll(v, shift=s, axis=1)   # XLU slot; mask = one select
        return jnp.where(pos < s, 0.0, rolled)

    def causal_conv(v, w_flat, b, pos):
        # v: (C, W) compute dtype; w_flat: (C_out, k*C); b: (C_out, 1) f32.
        c = v.shape[0]
        if k * c <= 128:
            # Tiny contraction: fuse the k taps into one im2col MXU matmul.
            taps = [shift(v, (k - 1 - t) * d, pos) for t in range(k)]
            acc = jnp.dot(w_flat, jnp.concatenate(taps, axis=0),
                          preferred_element_type=jnp.float32)
        else:
            # Wide channels: accumulate k dots, no k-times operand blow-up.
            acc = jnp.zeros((w_flat.shape[0], v.shape[1]), jnp.float32)
            for t in range(k):
                vt = shift(v, (k - 1 - t) * d, pos)
                acc = acc + jnp.dot(w_flat[:, t * c:(t + 1) * c], vt,
                                    preferred_element_type=jnp.float32)
        return acc + b

    def kernel(*refs):
        it = iter(refs)
        x_cur_ref = next(it)
        x_halo_ref = next(it) if has_halo else None
        w1_ref, b1_ref, w2_ref, b2_ref = next(it), next(it), next(it), next(it)
        if has_downsample:
            wd_ref, bd_ref = next(it), next(it)
        o_ref = next(it)

        if has_halo:
            j = pl.program_id(1)
            x_tile = x_cur_ref[0]                              # (C_in, TL)
            prev = x_halo_ref[0]                               # (C_in, halo)
            prev = jnp.where(j > 0, prev, jnp.zeros_like(prev))
            x_win = jnp.concatenate([prev, x_tile], axis=1)    # (C_in, halo+TL)
        else:
            j = None
            x_tile = x_cur_ref[...]                            # (C_in, TL)
            x_win = x_tile

        width = x_win.shape[1]
        col = jax.lax.broadcasted_iota(jnp.int32, (1, width), 1)
        pos = col if has_halo else col % seg_len               # per-sample pos

        x_c = x_win.astype(compute_dtype)
        h = jnp.maximum(causal_conv(x_c, w1_ref[...], b1_ref[...], pos), 0.0)
        if has_halo:
            # Zero hidden activations at absolute time < 0 (first tile only),
            # matching conv2's causal zero padding at the sequence start.
            h = jnp.where(col < (halo - j * tile_lanes), 0.0, h)
        # dropout == identity (inference)
        out = jnp.maximum(
            causal_conv(h.astype(compute_dtype), w2_ref[...], b2_ref[...], pos),
            0.0)
        if has_halo:
            out = out[:, halo:]                                # drop halo cols

        if has_downsample:
            res = jnp.dot(wd_ref[...], x_tile.astype(compute_dtype),
                          preferred_element_type=jnp.float32) + bd_ref[...]
        else:
            res = x_tile.astype(jnp.float32)                   # exact identity

        y = jnp.maximum(out + res, 0.0).astype(o_ref.dtype)
        if has_halo:
            o_ref[0] = y
        else:
            o_ref[...] = y

    return kernel


def temporal_block(x, params, *, kernel_size, dilation,
                   compute_dtype=jnp.float32,
                   fold_max_len=1024, target_lanes=1024, time_tile_lanes=512):
    """TemporalBlock forward.

    x: (N, C_in, L) float32, PyTorch Conv1d layout.  Returns (N, C_out, L) f32.
    params (PyTorch layouts):
      w1: (C_out, C_in, k),  b1: (C_out,)
      w2: (C_out, C_out, k), b2: (C_out,)
      wd: (C_out, C_in) or None, bd: (C_out,) or None   (1x1 downsample conv)
    compute_dtype: MXU operand dtype (jnp.bfloat16 recommended on v5e/v6e/v7x);
    accumulation, bias adds, ReLU and the residual add are always float32.
    """
    w1, b1, w2, b2 = params["w1"], params["b1"], params["w2"], params["b2"]
    wd, bd = params.get("wd"), params.get("bd")
    N, c_in, L = x.shape
    c_out, _, k = w1.shape
    assert k == kernel_size
    has_downsample = wd is not None
    if not has_downsample:
        assert c_in == c_out, "identity residual requires C_in == C_out"

    sub = _sublane(compute_dtype)
    c_in_p, c_out_p = _round_up(c_in, sub), _round_up(c_out, sub)
    # Keep x f32 when the residual is the identity so it stays bit-exact;
    # otherwise store x directly in the (possibly narrower) compute dtype.
    x_dtype = compute_dtype if has_downsample else jnp.float32
    x_item = jnp.dtype(x_dtype).itemsize
    c_item = jnp.dtype(compute_dtype).itemsize

    # ---- parameters: pad channels to sublane multiples, flatten taps --------
    def conv_w(w, ci_p):
        co, ci, kk = w.shape
        wp = jnp.zeros((c_out_p, ci_p, kk), w.dtype).at[:co, :ci, :].set(w)
        # (C_out_p, C_in_p, k) -> (C_out_p, k*C_in_p); column block t holds tap
        # t, matching the in-kernel shift order (k-1-t)*dilation.
        return jnp.transpose(wp, (0, 2, 1)).reshape(
            c_out_p, kk * ci_p).astype(compute_dtype)

    def bias(b):
        return jnp.zeros((c_out_p, 1), jnp.float32).at[:c_out, 0].set(
            b.astype(jnp.float32))

    weight_args = [conv_w(w1, c_in_p), bias(b1), conv_w(w2, c_out_p), bias(b2)]
    if has_downsample:
        wd_p = jnp.zeros((c_out_p, c_in_p), compute_dtype).at[
            :c_out, :c_in].set(wd.astype(compute_dtype))
        weight_args += [wd_p, bias(bd)]
    weight_bytes = sum(int(a.size) * a.dtype.itemsize for a in weight_args)

    # Rough per-lane VMEM cost: double-buffered x/out blocks + conv temporaries.
    per_lane = (2 * (c_in_p * x_item + c_out_p * 4)
                + k * c_in_p * c_item + k * c_out_p * c_item + 4 * c_out_p * 4)

    g_unit = _LANE // math.gcd(L, _LANE)   # min samples/tile for 128-lane tiles
    use_fold = (L <= fold_max_len) and (g_unit * L * per_lane <= _VMEM_BUDGET)

    if use_fold:
        # ---- fold path: batch folded onto lanes, whole sample per tile ------
        halo = 0
        max_lanes = max(g_unit * L, (_VMEM_BUDGET // per_lane // _LANE) * _LANE)
        G = max(1, min(target_lanes, max_lanes) // L)
        G = max(g_unit, (G // g_unit) * g_unit)
        G = min(G, _round_up(N, g_unit))
        n_pad = _round_up(N, G)
        TL = G * L                              # multiple of 128 by construction
        num_steps = n_pad // G

        x_p = jnp.zeros((n_pad, c_in_p, L), x_dtype).at[:N, :c_in, :].set(
            x.astype(x_dtype))
        x_fold = jnp.transpose(x_p, (1, 0, 2)).reshape(c_in_p, n_pad * L)

        grid = (num_steps,)
        cmap = lambda g: (0, 0)
        in_specs = ([pl.BlockSpec((c_in_p, TL), lambda g: (0, g))]
                    + [pl.BlockSpec(a.shape, cmap) for a in weight_args])
        out_specs = pl.BlockSpec((c_out_p, TL), lambda g: (0, g))
        out_shape = jax.ShapeDtypeStruct((c_out_p, n_pad * L), jnp.float32)
        args = [x_fold] + weight_args
        dims = ("parallel",)
        seg_len, tile_lanes, has_halo = L, TL, False
        lanes_total = n_pad * L
        x_bytes = lanes_total * c_in_p * x_item
    else:
        # ---- time-tiled path: one sample per step, causal halo per tile -----
        halo = _round_up(2 * (k - 1) * dilation, _LANE)
        max_tl = max(_LANE, (_VMEM_BUDGET // per_lane // _LANE) * _LANE)
        TL = min(_round_up(time_tile_lanes, _LANE), max_tl)
        TL = _round_up(max(TL, halo), halo)     # halo blocks must tile TL
        L_pad = _round_up(L, TL)
        num_t = L_pad // TL
        r = TL // halo                          # halo blocks per time tile

        x_p = jnp.zeros((N, c_in_p, L_pad), x_dtype).at[:, :c_in, :L].set(
            x.astype(x_dtype))

        grid = (N, num_t)
        cmap = lambda b, j: (0, 0)
        in_specs = ([pl.BlockSpec((1, c_in_p, TL), lambda b, j: (b, 0, j)),
                     # previous tile's last `halo` columns (clamped at j == 0;
                     # the kernel zeroes them there -> causal zero padding)
                     pl.BlockSpec((1, c_in_p, halo),
                                  lambda b, j: (b, 0, jnp.maximum(j * r - 1, 0)))]
                    + [pl.BlockSpec(a.shape, cmap) for a in weight_args])
        out_specs = pl.BlockSpec((1, c_out_p, TL), lambda b, j: (b, 0, j))
        out_shape = jax.ShapeDtypeStruct((N, c_out_p, L_pad), jnp.float32)
        args = [x_p, x_p] + weight_args
        dims = ("parallel", "parallel")
        seg_len, tile_lanes, has_halo = TL + halo, TL, True
        lanes_total = N * L_pad
        x_bytes = (lanes_total * c_in_p * x_item
                   + N * num_t * halo * c_in_p * x_item)

    kernel = _make_kernel(kernel_size=k, dilation=dilation, seg_len=seg_len,
                          halo=halo, tile_lanes=tile_lanes,
                          has_downsample=has_downsample, has_halo=has_halo,
                          compute_dtype=compute_dtype)

    flops = 2 * lanes_total * c_out_p * (k * c_in_p + k * c_out_p
                                         + (c_in_p if has_downsample else 0))
    cost = pl.CostEstimate(
        flops=int(flops), transcendentals=0,
        bytes_accessed=int(x_bytes + lanes_total * c_out_p * 4 + weight_bytes))

    out = pl.pallas_call(
        kernel,
        out_shape=out_shape,
        grid_spec=pltpu.PrefetchScalarGridSpec(
            num_scalar_prefetch=0, grid=grid,
            in_specs=in_specs, out_specs=out_specs),
        compiler_params=pltpu.CompilerParams(
            dimension_semantics=dims, vmem_limit_bytes=_VMEM_LIMIT),
        cost_estimate=cost,
    )(*args)

    if use_fold:
        out = out.reshape(c_out_p, n_pad, L).transpose(1, 0, 2)
        return out[:N, :c_out, :]
    return out[:, :c_out, :L]


def _reference(x, params, *, kernel_size, dilation):
    """Pure-JAX reference (lax conv) for numerical sanity checks."""
    w1, b1, w2, b2 = params["w1"], params["b1"], params["w2"], params["b2"]
    wd, bd = params.get("wd"), params.get("bd")
    p = (kernel_size - 1) * dilation

    def causal_conv(inp, w, b):
        y = jax.lax.conv_general_dilated(
            inp, w, window_strides=(1,), padding=[(p, 0)],
            rhs_dilation=(dilation,),
            dimension_numbers=("NCH", "OIH", "NCH"))
        return y + b[None, :, None]

    h = jnp.maximum(causal_conv(x, w1, b1), 0.0)
    out = jnp.maximum(causal_conv(h, w2, b2), 0.0)
    if wd is not None:
        res = jnp.einsum("oc,ncl->nol", wd, x) + bd[None, :, None]
    else:
        res = x
    return jnp.maximum(out + res, 0.0)


if __name__ == "__main__":
    # Module config: n_inputs=4, n_outputs=8, kernel_size=3, stride=1,
    # dilation=2, padding=(k-1)*dilation=4, dropout=0.2 (identity at eval).
    n_inputs, n_outputs, kernel_size, dilation = 4, 8, 3, 2
    batch, seq = 2, 16

    key = jax.random.PRNGKey(0)
    kx, k1, k2, k3, kb1, kb2, kb3 = jax.random.split(key, 7)

    x = jax.random.normal(kx, (batch, n_inputs, seq), dtype=jnp.float32)

    # Deterministic synthetic parameters, PyTorch Conv1d weight layout
    # (C_out, C_in, k); weights ~ N(0, 0.01) as in init_weights().
    params = {
        "w1": 0.01 * jax.random.normal(k1, (n_outputs, n_inputs, kernel_size),
                                       dtype=jnp.float32),
        "b1": 0.01 * jax.random.normal(kb1, (n_outputs,), dtype=jnp.float32),
        "w2": 0.01 * jax.random.normal(k2, (n_outputs, n_outputs, kernel_size),
                                       dtype=jnp.float32),
        "b2": 0.01 * jax.random.normal(kb2, (n_outputs,), dtype=jnp.float32),
        "wd": 0.01 * jax.random.normal(k3, (n_outputs, n_inputs),
                                       dtype=jnp.float32),
        "bd": 0.01 * jax.random.normal(kb3, (n_outputs,), dtype=jnp.float32),
    }

    # 1) short-sequence (batch-folded, lane-dense) path, f32 operands.
    out = temporal_block(x, params, kernel_size=kernel_size, dilation=dilation)
    out = jax.block_until_ready(out)
    ref = _reference(x, params, kernel_size=kernel_size, dilation=dilation)
    assert out.shape == (batch, n_outputs, seq)
    assert jnp.allclose(out, ref, atol=1e-5, rtol=1e-5)

    # 2) same problem with bf16 MXU operands (recommended on v5e/v6e/v7x);
    #    accumulation / bias / ReLU / residual stay f32.
    out_bf16 = temporal_block(x, params, kernel_size=kernel_size,
                              dilation=dilation, compute_dtype=jnp.bfloat16)
    out_bf16 = jax.block_until_ready(out_bf16)
    assert jnp.allclose(out_bf16, ref, atol=5e-3, rtol=5e-2)

    # 3) long-sequence path: time tiling with a causal halo across tiles.
    seq_long = 256
    x_long = jax.random.normal(kx, (batch, n_inputs, seq_long),
                               dtype=jnp.float32)
    out_long = temporal_block(x_long, params, kernel_size=kernel_size,
                              dilation=dilation, fold_max_len=128,
                              time_tile_lanes=128)
    out_long = jax.block_until_ready(out_long)
    ref_long = _reference(x_long, params, kernel_size=kernel_size,
                          dilation=dilation)
    assert out_long.shape == (batch, n_outputs, seq_long)
    assert jnp.allclose(out_long, ref_long, atol=1e-5, rtol=1e-5)

    print("KERNEL_OK")
</pallas_src>

<mosaic_0001>
module attributes {stable_mosaic.version = 11 : i64} {
  func.func @kernel(%arg0: i32, %arg1: memref<8x128xf32, #tpu.memory_space<vmem>>, %arg2: memref<8x24xf32, #tpu.memory_space<vmem>>, %arg3: memref<8x1xf32, #tpu.memory_space<vmem>>, %arg4: memref<8x24xf32, #tpu.memory_space<vmem>>, %arg5: memref<8x1xf32, #tpu.memory_space<vmem>>, %arg6: memref<8x8xf32, #tpu.memory_space<vmem>>, %arg7: memref<8x1xf32, #tpu.memory_space<vmem>>, %arg8: memref<8x128xf32, #tpu.memory_space<vmem>>) attributes {dimension_semantics = [#tpu.dimension_semantics<parallel>], iteration_bounds = array<i64: 1>, scalar_prefetch = 0 : i64, scratch_operands = 0 : i64, tpu.core_type = #tpu.core_type<tc>, window_params = [{transform_indices = @transform_0, window_bounds = array<i64: 8, 128>}, {pipeline_mode = #tpu.pipeline_mode<synchronous>, transform_indices = @transform_1, window_bounds = array<i64: 8, 24>}, {pipeline_mode = #tpu.pipeline_mode<synchronous>, transform_indices = @transform_2, window_bounds = array<i64: 8, 1>}, {pipeline_mode = #tpu.pipeline_mode<synchronous>, transform_indices = @transform_3, window_bounds = array<i64: 8, 24>}, {pipeline_mode = #tpu.pipeline_mode<synchronous>, transform_indices = @transform_4, window_bounds = array<i64: 8, 1>}, {pipeline_mode = #tpu.pipeline_mode<synchronous>, transform_indices = @transform_5, window_bounds = array<i64: 8, 8>}, {pipeline_mode = #tpu.pipeline_mode<synchronous>, transform_indices = @transform_6, window_bounds = array<i64: 8, 1>}, {transform_indices = @transform_7, window_bounds = array<i64: 8, 128>}]} {
    %c0 = arith.constant 0 : index
    %c0_0 = arith.constant 0 : index
    %0 = vector.load %arg1[%c0, %c0_0] : memref<8x128xf32, #tpu.memory_space<vmem>>, vector<8x128xf32>
    %1 = tpu.iota {dimensions = array<i32: 1>} : vector<1x128xi32>
    %c16_i32 = arith.constant 16 : i32
    %c0_i32 = arith.constant 0 : i32
    %2 = arith.cmpi eq, %c16_i32, %c0_i32 : i32
    %c1_i32 = arith.constant 1 : i32
    %3 = arith.select %2, %c1_i32, %c16_i32 : i32
    %4 = vector.broadcast %3 : i32 to vector<1x128xi32>
    %5 = arith.remsi %1, %4 : vector<1x128xi32>
    %c0_i32_1 = arith.constant 0 : i32
    %6 = vector.broadcast %c0_i32_1 : i32 to vector<1x128xi32>
    %7 = arith.cmpi ne, %5, %6 : vector<1x128xi32>
    %c0_i32_2 = arith.constant 0 : i32
    %8 = vector.broadcast %c0_i32_2 : i32 to vector<1x128xi32>
    %9 = arith.cmpi slt, %5, %8 : vector<1x128xi32>
    %c0_i32_3 = arith.constant 0 : i32
    %10 = arith.cmpi slt, %3, %c0_i32_3 : i32
    %11 = vector.broadcast %10 : i1 to vector<1x128xi1>
    %12 = vector.broadcast %11 : vector<1x128xi1> to vector<1x128xi1>
    %13 = arith.xori %9, %12 : vector<1x128xi1>
    %14 = arith.andi %13, %7 : vector<1x128xi1>
    %15 = vector.broadcast %3 : i32 to vector<1x128xi32>
    %16 = arith.addi %5, %15 : vector<1x128xi32>
    %17 = arith.select %14, %16, %5 : vector<1x128xi1>, vector<1x128xi32>
    %c0_4 = arith.constant 0 : index
    %c0_5 = arith.constant 0 : index
    %18 = vector.load %arg2[%c0_4, %c0_5] : memref<8x24xf32, #tpu.memory_space<vmem>>, vector<8x24xf32>
    %c0_6 = arith.constant 0 : index
    %c0_7 = arith.constant 0 : index
    %19 = vector.load %arg3[%c0_6, %c0_7] : memref<8x1xf32, #tpu.memory_space<vmem>>, vector<8x1xf32>
    %c4_i32 = arith.constant 4 : i32
    %20 = tpu.dynamic_rotate %0 by %c4_i32 dim 1 : vector<8x128xf32>, i32 -> vector<8x128xf32>
    %c4_i32_8 = arith.constant 4 : i32
    %21 = vector.broadcast %c4_i32_8 : i32 to vector<1x128xi32>
    %22 = arith.cmpi slt, %17, %21 : vector<1x128xi32>
    %cst = arith.constant 0.000000e+00 : f32
    %23 = vector.shape_cast %22 : vector<1x128xi1> to vector<1x128xi1>
    %24 = vector.broadcast %23 : vector<1x128xi1> to vector<8x128xi1>
    %25 = vector.broadcast %cst : f32 to vector<8x128xf32>
    %26 = arith.select %24, %25, %20 : vector<8x128xi1>, vector<8x128xf32>
    %c2_i32 = arith.constant 2 : i32
    %27 = tpu.dynamic_rotate %0 by %c2_i32 dim 1 : vector<8x128xf32>, i32 -> vector<8x128xf32>
    %c2_i32_9 = arith.constant 2 : i32
    %28 = vector.broadcast %c2_i32_9 : i32 to vector<1x128xi32>
    %29 = arith.cmpi slt, %17, %28 : vector<1x128xi32>
    %cst_10 = arith.constant 0.000000e+00 : f32
    %30 = vector.shape_cast %29 : vector<1x128xi1> to vector<1x128xi1>
    %31 = vector.broadcast %30 : vector<1x128xi1> to vector<8x128xi1>
    %32 = vector.broadcast %cst_10 : f32 to vector<8x128xf32>
    %33 = arith.select %31, %32, %27 : vector<8x128xi1>, vector<8x128xf32>
    %34 = tpu.concatenate %26, %33, %0 in 0 : vector<8x128xf32>, vector<8x128xf32>, vector<8x128xf32> -> vector<24x128xf32>
    %cst_11 = arith.constant dense<0.000000e+00> : vector<8x128xf32>
    %35 = tpu.matmul %18, %34, %cst_11 {dimension_numbers = #tpu.dot_dimension_numbers<[1], [0], [0], [1], [0, 0, 1, 1], [], []>} : vector<8x24xf32>, vector<24x128xf32>, vector<8x128xf32> -> vector<8x128xf32>
    %36 = vector.broadcast %19 : vector<8x1xf32> to vector<8x128xf32>
    %37 = arith.addf %35, %36 : vector<8x128xf32>
    %cst_12 = arith.constant 0.000000e+00 : f32
    %38 = vector.broadcast %cst_12 : f32 to vector<8x128xf32>
    %39 = arith.maximumf %37, %38 : vector<8x128xf32>
    %c0_13 = arith.constant 0 : index
    %c0_14 = arith.constant 0 : index
    %40 = vector.load %arg4[%c0_13, %c0_14] : memref<8x24xf32, #tpu.memory_space<vmem>>, vector<8x24xf32>
    %c0_15 = arith.constant 0 : index
    %c0_16 = arith.constant 0 : index
    %41 = vector.load %arg5[%c0_15, %c0_16] : memref<8x1xf32, #tpu.memory_space<vmem>>, vector<8x1xf32>
    %c4_i32_17 = arith.constant 4 : i32
    %42 = tpu.dynamic_rotate %39 by %c4_i32_17 dim 1 : vector<8x128xf32>, i32 -> vector<8x128xf32>
    %c4_i32_18 = arith.constant 4 : i32
    %43 = vector.broadcast %c4_i32_18 : i32 to vector<1x128xi32>
    %44 = arith.cmpi slt, %17, %43 : vector<1x128xi32>
    %cst_19 = arith.constant 0.000000e+00 : f32
    %45 = vector.shape_cast %44 : vector<1x128xi1> to vector<1x128xi1>
    %46 = vector.broadcast %45 : vector<1x128xi1> to vector<8x128xi1>
    %47 = vector.broadcast %cst_19 : f32 to vector<8x128xf32>
    %48 = arith.select %46, %47, %42 : vector<8x128xi1>, vector<8x128xf32>
    %c2_i32_20 = arith.constant 2 : i32
    %49 = tpu.dynamic_rotate %39 by %c2_i32_20 dim 1 : vector<8x128xf32>, i32 -> vector<8x128xf32>
    %c2_i32_21 = arith.constant 2 : i32
    %50 = vector.broadcast %c2_i32_21 : i32 to vector<1x128xi32>
    %51 = arith.cmpi slt, %17, %50 : vector<1x128xi32>
    %cst_22 = arith.constant 0.000000e+00 : f32
    %52 = vector.shape_cast %51 : vector<1x128xi1> to vector<1x128xi1>
    %53 = vector.broadcast %52 : vector<1x128xi1> to vector<8x128xi1>
    %54 = vector.broadcast %cst_22 : f32 to vector<8x128xf32>
    %55 = arith.select %53, %54, %49 : vector<8x128xi1>, vector<8x128xf32>
    %56 = tpu.concatenate %48, %55, %39 in 0 : vector<8x128xf32>, vector<8x128xf32>, vector<8x128xf32> -> vector<24x128xf32>
    %cst_23 = arith.constant dense<0.000000e+00> : vector<8x128xf32>
    %57 = tpu.matmul %40, %56, %cst_23 {dimension_numbers = #tpu.dot_dimension_numbers<[1], [0], [0], [1], [0, 0, 1, 1], [], []>} : vector<8x24xf32>, vector<24x128xf32>, vector<8x128xf32> -> vector<8x128xf32>
    %58 = vector.broadcast %41 : vector<8x1xf32> to vector<8x128xf32>
    %59 = arith.addf %57, %58 : vector<8x128xf32>
    %cst_24 = arith.constant 0.000000e+00 : f32
    %60 = vector.broadcast %cst_24 : f32 to vector<8x128xf32>
    %61 = arith.maximumf %59, %60 : vector<8x128xf32>
    %c0_25 = arith.constant 0 : index
    %c0_26 = arith.constant 0 : index
    %62 = vector.load %arg6[%c0_25, %c0_26] : memref<8x8xf32, #tpu.memory_space<vmem>>, vector<8x8xf32>
    %cst_27 = arith.constant dense<0.000000e+00> : vector<8x128xf32>
    %63 = tpu.matmul %62, %0, %cst_27 {dimension_numbers = #tpu.dot_dimension_numbers<[1], [0], [0], [1], [0, 0, 1, 1], [], []>} : vector<8x8xf32>, vector<8x128xf32>, vector<8x128xf32> -> vector<8x128xf32>
    %c0_28 = arith.constant 0 : index
    %c0_29 = arith.constant 0 : index
    %64 = vector.load %arg7[%c0_28, %c0_29] : memref<8x1xf32, #tpu.memory_space<vmem>>, vector<8x1xf32>
    %65 = vector.broadcast %64 : vector<8x1xf32> to vector<8x128xf32>
    %66 = arith.addf %63, %65 : vector<8x128xf32>
    %67 = arith.addf %61, %66 : vector<8x128xf32>
    %cst_30 = arith.constant 0.000000e+00 : f32
    %68 = vector.broadcast %cst_30 : f32 to vector<8x128xf32>
    %69 = arith.maximumf %67, %68 : vector<8x128xf32>
    %c0_31 = arith.constant 0 : index
    %c0_32 = arith.constant 0 : index
    %70 = vector.load %arg8[%c0_31, %c0_32] : memref<8x128xf32, #tpu.memory_space<vmem>>, vector<8x128xf32>
    tpu.vector_store %arg8[%c0_31, %c0_32], %69 {strides = array<i32>} : memref<8x128xf32, #tpu.memory_space<vmem>>, vector<8x128xf32>,
    return
  }
  func.func @transform_0(%arg0: i32) -> (i32, i32) {
    %c0_i32 = arith.constant 0 : i32
    %c0_i32_0 = arith.constant 0 : i32
    return %c0_i32, %arg0 : i32, i32
  }
  func.func @transform_1(%arg0: i32) -> (i32, i32) {
    %c0_i32 = arith.constant 0 : i32
    %c0_i32_0 = arith.constant 0 : i32
    %c0_i32_1 = arith.constant 0 : i32
    return %c0_i32, %c0_i32_0 : i32, i32
  }
  func.func @transform_2(%arg0: i32) -> (i32, i32) {
    %c0_i32 = arith.constant 0 : i32
    %c0_i32_0 = arith.constant 0 : i32
    %c0_i32_1 = arith.constant 0 : i32
    return %c0_i32, %c0_i32_0 : i32, i32
  }
  func.func @transform_3(%arg0: i32) -> (i32, i32) {
    %c0_i32 = arith.constant 0 : i32
    %c0_i32_0 = arith.constant 0 : i32
    %c0_i32_1 = arith.constant 0 : i32
    return %c0_i32, %c0_i32_0 : i32, i32
  }
  func.func @transform_4(%arg0: i32) -> (i32, i32) {
    %c0_i32 = arith.constant 0 : i32
    %c0_i32_0 = arith.constant 0 : i32
    %c0_i32_1 = arith.constant 0 : i32
    return %c0_i32, %c0_i32_0 : i32, i32
  }
  func.func @transform_5(%arg0: i32) -> (i32, i32) {
    %c0_i32 = arith.constant 0 : i32
    %c0_i32_0 = arith.constant 0 : i32
    %c0_i32_1 = arith.constant 0 : i32
    return %c0_i32, %c0_i32_0 : i32, i32
  }
  func.func @transform_6(%arg0: i32) -> (i32, i32) {
    %c0_i32 = arith.constant 0 : i32
    %c0_i32_0 = arith.constant 0 : i32
    %c0_i32_1 = arith.constant 0 : i32
    return %c0_i32, %c0_i32_0 : i32, i32
  }
  func.func @transform_7(%arg0: i32) -> (i32, i32) {
    %c0_i32 = arith.constant 0 : i32
    %c0_i32_0 = arith.constant 0 : i32
    return %c0_i32, %arg0 : i32, i32
  }
}

</mosaic_0001>

<llo_original>
// kernel: tpu_custom_call.1
$region0: #{tpu_custom_call.1}
  #allocation0 [shape = 'u32[]', space=smem, size = 0x4, offset = 0x4, fixed_abs, tag = 'smem constant byte address 0x4 - core index']
  #allocation1 [shape = 'u32[144,128]{1,0:T(1,128)}', space=vmem, size = 0x12000, scoped, tag = 'internal scratch']
  %s0 = inlined_call_operand.vmem [shape: f32[8,128], index: 0, kind: input, shape index: {}]
  %s1 = inlined_call_operand.vmem [shape: f32[8,24], index: 1, kind: input, shape index: {}]
  %s2 = inlined_call_operand.vmem [shape: f32[8,1], index: 2, kind: input, shape index: {}]
  %s3 = inlined_call_operand.vmem [shape: f32[8,24], index: 3, kind: input, shape index: {}]
  %s4 = inlined_call_operand.vmem [shape: f32[8,1], index: 4, kind: input, shape index: {}]
  %s5 = inlined_call_operand.vmem [shape: f32[8,8], index: 5, kind: input, shape index: {}]
  %s6 = inlined_call_operand.vmem [shape: f32[8,1], index: 6, kind: input, shape index: {}]
  %s7 = inlined_call_operand.hbm [shape: f32[8,128], index: 7, kind: output, shape index: {}]
  %s8 = sld [smem:[#allocation0]]
  $region38: #{tpu_custom_call.1} parent=0
    _
  %s10 = ssub.s32 1, %s8
  %s11 = scalar_select 0, %s10, %s8
  $region1: #{tpu_custom_call.1} parent=0
    #allocation2 [shape = 'u8[4096]{0}', space=vmem, size = 0x1000, scoped, tag = 'output window, operand 0, single buffered']
    #allocation3 [shape = 's32[1]{0}', space=sflag, size = 0x4, scoped, tag = 'scoped memory for tpu_custom_call.1']
    %12 = vsyncpa [#allocation3], 0
    // Predicated region
    $region2: #{tpu_custom_call.1} parent=1 // pred_check
      _
    $region3: #{tpu_custom_call.1} parent=1 // pred_check_branch
      %14 = sbr.rel (0) target = $region5
    $region4: #{tpu_custom_call.1} parent=1 // pred_region
      _
    $region5: #{tpu_custom_call.1} parent=1 // pred_fallthru
      _
    // Predicated region
    $region6: #{tpu_custom_call.1} parent=1 // pred_check
      _
    $region7: #{tpu_custom_call.1} parent=1 // pred_check_branch
      %16 = sbr.rel (0) target = $region9
    $region8: #{tpu_custom_call.1} parent=1 // pred_region
      _
    $region9: #{tpu_custom_call.1} parent=1 // pred_fallthru
      _
    // Predicated region
    $region10: #{tpu_custom_call.1} parent=1 // pred_check
      _
    $region11: #{tpu_custom_call.1} parent=1 // pred_check_branch
      %18 = sbr.rel (0) target = $region13
    $region12: #{tpu_custom_call.1} parent=1 // pred_region
      _
    $region13: #{tpu_custom_call.1} parent=1 // pred_fallthru
      _
    // Predicated region
    $region14: #{tpu_custom_call.1} parent=1 // pred_check
      _
    $region15: #{tpu_custom_call.1} parent=1 // pred_check_branch
      %20 = sbr.rel (0) target = $region17
    $region16: #{tpu_custom_call.1} parent=1 // pred_region
      _
    $region17: #{tpu_custom_call.1} parent=1 // pred_fallthru
      _
    // Predicated region
    $region18: #{tpu_custom_call.1} parent=1 // pred_check
      _
    $region19: #{tpu_custom_call.1} parent=1 // pred_check_branch
      %22 = sbr.rel (0) target = $region21
    $region20: #{tpu_custom_call.1} parent=1 // pred_region
      _
    $region21: #{tpu_custom_call.1} parent=1 // pred_fallthru
      _
    // Predicated region
    $region22: #{tpu_custom_call.1} parent=1 // pred_check
      _
    $region23: #{tpu_custom_call.1} parent=1 // pred_check_branch
      %24 = sbr.rel (0) target = $region25
    $region24: #{tpu_custom_call.1} parent=1 // pred_region
      _
    $region25: #{tpu_custom_call.1} parent=1 // pred_fallthru
      _
    // Predicated region
    $region26: #{tpu_custom_call.1} parent=1 // pred_check
      _
    $region27: #{tpu_custom_call.1} parent=1 // pred_check_branch
      %26 = sbr.rel (0) target = $region29
    $region28: #{tpu_custom_call.1} parent=1 // pred_region
      _
    $region29: #{tpu_custom_call.1} parent=1 // pred_fallthru
      _
    %v27 = vld [vmem:[%s0] sm:$0xff]
    %v28 = vlaneseq
    %v29 = vand.u32 %v28, 127
    %vm30 = vcmp.lt.s32.totalorder %v29, 0
    %v31 = vsub.s32 0, %v29
    %v32 = vsel %vm30, %v31, %v29
    %v33 = vshrl.u32 %v32, 4
    %v34 = vand.u32 %v32, 15
    %v35 = vsub.s32 0, %v34
    %v36 = vsel %vm30, %v35, %v34
    %vm37 = vcmp.ne.s32.totalorder %v36, 0
    %vm38 = vcmp.lt.s32.totalorder %v36, 0
    %vm39 = vmand %vm38, %vm37
    %v40 = vadd.s32 %v36, 16
    %v41 = vsel %vm39, %v40, %v36
    %v42 = vld [vmem:[%s1] sm:$0xff]
    %v43 = vld [vmem:[%s2] sm:$0xff]
    %44 = vrot.lane.b32.xlu0 %v27, 4
    %v45 = vpop.permute.xlu0 %44
    %vm46 = vcmp.lt.s32.totalorder %v41, 4
    %v47 = vsel %vm46, 1, 0
    %vm48 = vcmp.eq.s32.totalorder %v47, 1
    %v49 = vsel %vm48, 0.0, %v45
    %50 = vrot.lane.b32.xlu0 %v27, 2
    %v51 = vpop.permute.xlu0 %50
    %vm52 = vcmp.lt.s32.totalorder %v41, 2
    %v53 = vsel %vm52, 1, 0
    %vm54 = vcmp.eq.s32.totalorder %v53, 1
    %v55 = vsel %vm54, 0.0, %v51
    %57 = vset.pattern.permute.xlu0 0
    %58 = vperm.xlu0 %57, %v43
    %v59 = vpop.permute.xlu0 %58
    %vm61 = vcmask 195584
    %v63 = vsel %vm61, %v42, 0
    %65 = vmatprep.subr.mxu0 0.0
    %66 = vmatpush1.msra.mxu0 0.0
    %67 = vmatprep.subr.mxu0 0.0
    %68 = vmatpush1.msra.mxu0 0.0
    %69 = vmatprep.subr.mxu0 0.0
    %70 = vmatpush1.msra.mxu0 0.0
    %71 = vmatprep.subr.mxu0 0.0
    %72 = vmatpush1.msra.mxu0 0.0
    %73 = vmatprep.subr.mxu0 0.0
    %74 = vmatpush1.msra.mxu0 0.0
    %75 = vmatprep.subr.mxu0 0.0
    %76 = vmatpush1.msra.mxu0 0.0
    %77 = vmatprep.subr.mxu0 0.0
    %78 = vmatpush1.msra.mxu0 0.0
    %79 = vmatprep.subr.mxu0 0.0
    %80 = vmatpush1.msra.mxu0 0.0
    %81 = vmatprep.subr.mxu0 0.0
    %82 = vmatpush1.msra.mxu0 0.0
    %83 = vmatprep.subr.mxu0 0.0
    %84 = vmatpush1.msra.mxu0 0.0
    %85 = vmatprep.subr.mxu0 0.0
    %86 = vmatpush1.msra.mxu0 0.0
    %87 = vmatprep.subr.mxu0 0.0
    %88 = vmatpush1.msra.mxu0 0.0
    %89 = vmatprep.subr.mxu0 0.0
    %90 = vmatpush1.msra.mxu0 0.0
    %91 = vmatprep.subr.mxu0 0.0
    %92 = vmatpush1.msra.mxu0 %v27
    %93 = vmatprep.subr.mxu0 0.0
    %94 = vmatpush1.msra.mxu0 %v55
    %95 = vmatprep.subr.mxu0 0.0
    %96 = vmatpush1.msra.mxu0 %v49
    %97 = vmatprep.subr.mxu0 0.0
    %98 = vmatpush2.msra.mxu0 0.0
    %99 = vmatprep.subr.mxu0 0.0
    %100 = vmatpush2.msra.mxu0 0.0
    %101 = vmatprep.subr.mxu0 0.0
    %102 = vmatpush2.msra.mxu0 0.0
    %103 = vmatprep.subr.mxu0 0.0
    %104 = vmatpush2.msra.mxu0 0.0
    %105 = vmatprep.subr.mxu0 0.0
    %106 = vmatpush2.msra.mxu0 0.0
    %107 = vmatprep.subr.mxu0 0.0
    %108 = vmatpush2.msra.mxu0 0.0
    %109 = vmatprep.subr.mxu0 0.0
    %110 = vmatpush2.msra.mxu0 0.0
    %111 = vmatprep.subr.mxu0 0.0
    %112 = vmatpush2.msra.mxu0 0.0
    %113 = vmatprep.subr.mxu0 0.0
    %114 = vmatpush2.msra.mxu0 0.0
    %115 = vmatprep.subr.mxu0 0.0
    %116 = vmatpush2.msra.mxu0 0.0
    %117 = vmatprep.subr.mxu0 0.0
    %118 = vmatpush2.msra.mxu0 0.0
    %119 = vmatprep.subr.mxu0 0.0
    %120 = vmatpush2.msra.mxu0 0.0
    %121 = vmatprep.subr.mxu0 0.0
    %122 = vmatpush2.msra.mxu0 0.0
    %123 = vmatprep.subr.mxu0 0.0
    %124 = vmatpush2.msra.mxu0 0.0
    %125 = vmatprep.subr.mxu0 0.0
    %126 = vmatpush2.msra.mxu0 0.0
    %127 = vmatprep.subr.mxu0 0.0
    %128 = vmatpush2.msra.mxu0 0.0
    %129 = vmatprep.mubr.f32.mxu0 0.0
    %130 = vmatmul.mubr.f32.gmra.mxu0 %v63
    %v131 = vpop.f32.mrf.mxu0
    %v132 = vadd.f32 %v59, %v131
    %v133 = vpop.f32.mrf.mxu0
    %134 = vdwg.mxu0
    %v135 = vmax.f32 %v132, 0.0
    %v136 = vld [vmem:[%s3] sm:$0xff]
    %v137 = vld [vmem:[%s4] sm:$0xff]
    %138 = vrot.lane.b32.xlu0 %v135, 4
    %v139 = vpop.permute.xlu0 %138
    %v140 = vsel %vm48, 0.0, %v139
    %141 = vrot.lane.b32.xlu0 %v135, 2
    %v142 = vpop.permute.xlu0 %141
    %v143 = vsel %vm54, 0.0, %v142
    %145 = vset.pattern.permute.xlu0 0
    %146 = vperm.xlu0 %145, %v137
    %v147 = vpop.permute.xlu0 %146
    %v150 = vsel %vm61, %v136, 0
    %152 = vmatprep.subr.mxu0 0.0
    %153 = vmatpush1.msra.mxu0 0.0
    %154 = vmatprep.subr.mxu0 0.0
    %155 = vmatpush1.msra.mxu0 0.0
    %156 = vmatprep.subr.mxu0 0.0
    %157 = vmatpush1.msra.mxu0 0.0
    %158 = vmatprep.subr.mxu0 0.0
    %159 = vmatpush1.msra.mxu0 0.0
    %160 = vmatprep.subr.mxu0 0.0
    %161 = vmatpush1.msra.mxu0 0.0
    %162 = vmatprep.subr.mxu0 0.0
    %163 = vmatpush1.msra.mxu0 0.0
    %164 = vmatprep.subr.mxu0 0.0
    %165 = vmatpush1.msra.mxu0 0.0
    %166 = vmatprep.subr.mxu0 0.0
    %167 = vmatpush1.msra.mxu0 0.0
    %168 = vmatprep.subr.mxu0 0.0
    %169 = vmatpush1.msra.mxu0 0.0
    %170 = vmatprep.subr.mxu0 0.0
    %171 = vmatpush1.msra.mxu0 0.0
    %172 = vmatprep.subr.mxu0 0.0
    %173 = vmatpush1.msra.mxu0 0.0
    %174 = vmatprep.subr.mxu0 0.0
    %175 = vmatpush1.msra.mxu0 0.0
    %176 = vmatprep.subr.mxu0 0.0
    %177 = vmatpush1.msra.mxu0 0.0
    %178 = vmatprep.subr.mxu0 0.0
    %179 = vmatpush1.msra.mxu0 %v135
    %180 = vmatprep.subr.mxu0 0.0
    %181 = vmatpush1.msra.mxu0 %v143
    %182 = vmatprep.subr.mxu0 0.0
    %183 = vmatpush1.msra.mxu0 %v140
    %184 = vmatprep.subr.mxu0 0.0
    %185 = vmatpush2.msra.mxu0 0.0
    %186 = vmatprep.subr.mxu0 0.0
    %187 = vmatpush2.msra.mxu0 0.0
    %188 = vmatprep.subr.mxu0 0.0
    %189 = vmatpush2.msra.mxu0 0.0
    %190 = vmatprep.subr.mxu0 0.0
    %191 = vmatpush2.msra.mxu0 0.0
    %192 = vmatprep.subr.mxu0 0.0
    %193 = vmatpush2.msra.mxu0 0.0
    %194 = vmatprep.subr.mxu0 0.0
    %195 = vmatpush2.msra.mxu0 0.0
    %196 = vmatprep.subr.mxu0 0.0
    %197 = vmatpush2.msra.mxu0 0.0
    %198 = vmatprep.subr.mxu0 0.0
    %199 = vmatpush2.msra.mxu0 0.0
    %200 = vmatprep.subr.mxu0 0.0
    %201 = vmatpush2.msra.mxu0 0.0
    %202 = vmatprep.subr.mxu0 0.0
    %203 = vmatpush2.msra.mxu0 0.0
    %204 = vmatprep.subr.mxu0 0.0
    %205 = vmatpush2.msra.mxu0 0.0
    %206 = vmatprep.subr.mxu0 0.0
    %207 = vmatpush2.msra.mxu0 0.0
    %208 = vmatprep.subr.mxu0 0.0
    %209 = vmatpush2.msra.mxu0 0.0
    %210 = vmatprep.subr.mxu0 0.0
    %211 = vmatpush2.msra.mxu0 0.0
    %212 = vmatprep.subr.mxu0 0.0
    %213 = vmatpush2.msra.mxu0 0.0
    %214 = vmatprep.subr.mxu0 0.0
    %215 = vmatpush2.msra.mxu0 0.0
    %216 = vmatprep.mubr.f32.mxu0 0.0
    %217 = vmatmul.mubr.f32.gmra.mxu0 %v150
    %v218 = vpop.f32.mrf.mxu0
    %v219 = vadd.f32 %v147, %v218
    %v220 = vpop.f32.mrf.mxu0
    %221 = vdwg.mxu0
    %v222 = vmax.f32 %v219, 0.0
    %v223 = vld [vmem:[%s5] sm:$0xff]
    %v224 = vld [vmem:[%s6] sm:$0xff]
    %226 = vset.pattern.permute.xlu0 0
    %227 = vperm.xlu0 %226, %v224
    %v228 = vpop.permute.xlu0 %227
    %vm230 = vcmask 64512
    %v232 = vsel %vm230, %v223, 0
    %234 = vmatprep.subr.mxu0 0.0
    %235 = vmatpush1.msra.mxu0 0.0
    %236 = vmatprep.subr.mxu0 0.0
    %237 = vmatpush1.msra.mxu0 0.0
    %238 = vmatprep.subr.mxu0 0.0
    %239 = vmatpush1.msra.mxu0 0.0
    %240 = vmatprep.subr.mxu0 0.0
    %241 = vmatpush1.msra.mxu0 0.0
    %242 = vmatprep.subr.mxu0 0.0
    %243 = vmatpush1.msra.mxu0 0.0
    %244 = vmatprep.subr.mxu0 0.0
    %245 = vmatpush1.msra.mxu0 0.0
    %246 = vmatprep.subr.mxu0 0.0
    %247 = vmatpush1.msra.mxu0 0.0
    %248 = vmatprep.subr.mxu0 0.0
    %249 = vmatpush1.msra.mxu0 0.0
    %250 = vmatprep.subr.mxu0 0.0
    %251 = vmatpush1.msra.mxu0 0.0
    %252 = vmatprep.subr.mxu0 0.0
    %253 = vmatpush1.msra.mxu0 0.0
    %254 = vmatprep.subr.mxu0 0.0
    %255 = vmatpush1.msra.mxu0 0.0
    %256 = vmatprep.subr.mxu0 0.0
    %257 = vmatpush1.msra.mxu0 0.0
    %258 = vmatprep.subr.mxu0 0.0
    %259 = vmatpush1.msra.mxu0 0.0
    %260 = vmatprep.subr.mxu0 0.0
    %261 = vmatpush1.msra.mxu0 0.0
    %262 = vmatprep.subr.mxu0 0.0
    %263 = vmatpush1.msra.mxu0 0.0
    %264 = vmatprep.subr.mxu0 0.0
    %265 = vmatpush1.msra.mxu0 %v27
    %266 = vmatprep.subr.mxu0 0.0
    %267 = vmatpush2.msra.mxu0 0.0
    %268 = vmatprep.subr.mxu0 0.0
    %269 = vmatpush2.msra.mxu0 0.0
    %270 = vmatprep.subr.mxu0 0.0
    %271 = vmatpush2.msra.mxu0 0.0
    %272 = vmatprep.subr.mxu0 0.0
    %273 = vmatpush2.msra.mxu0 0.0
    %274 = vmatprep.subr.mxu0 0.0
    %275 = vmatpush2.msra.mxu0 0.0
    %276 = vmatprep.subr.mxu0 0.0
    %277 = vmatpush2.msra.mxu0 0.0
    %278 = vmatprep.subr.mxu0 0.0
    %279 = vmatpush2.msra.mxu0 0.0
    %280 = vmatprep.subr.mxu0 0.0
    %281 = vmatpush2.msra.mxu0 0.0
    %282 = vmatprep.subr.mxu0 0.0
    %283 = vmatpush2.msra.mxu0 0.0
    %284 = vmatprep.subr.mxu0 0.0
    %285 = vmatpush2.msra.mxu0 0.0
    %286 = vmatprep.subr.mxu0 0.0
    %287 = vmatpush2.msra.mxu0 0.0
    %288 = vmatprep.subr.mxu0 0.0
    %289 = vmatpush2.msra.mxu0 0.0
    %290 = vmatprep.subr.mxu0 0.0
    %291 = vmatpush2.msra.mxu0 0.0
    %292 = vmatprep.subr.mxu0 0.0
    %293 = vmatpush2.msra.mxu0 0.0
    %294 = vmatprep.subr.mxu0 0.0
    %295 = vmatpush2.msra.mxu0 0.0
    %296 = vmatprep.subr.mxu0 0.0
    %297 = vmatpush2.msra.mxu0 0.0
    %298 = vmatprep.mubr.f32.mxu0 0.0
    %299 = vmatmul.mubr.f32.gmra.mxu0 %v232
    %v300 = vpop.f32.mrf.mxu0
    %v301 = vadd.f32 %v228, %v300
    %v302 = vpop.f32.mrf.mxu0
    %303 = vdwg.mxu0
    %v304 = vadd.f32 %v222, %v301
    %v305 = vmax.f32 %v304, 0.0
    %306 = vst [vmem:[#allocation2] sm:$0xff] %v305
    // Predicated region
    $region30: #{tpu_custom_call.1} parent=1 // pred_check
      _
    $region31: #{tpu_custom_call.1} parent=1 // pred_check_branch
      %308 = sbr.rel (0) target = $region33
    $region32: #{tpu_custom_call.1} parent=1 // pred_region
      %s310 = ssub.s32 128, 128
      %311 = vsyncadd [#allocation3], %s310
      %s313 = sshll.u32 [#allocation2], 4
      %s314 = int_to_ptr.vmem [resolvable:$true] %s313
      %316 = dma.vmem_to_hbm [thread:$0]  %s314, 128, %s7, [#allocation3]
    $region33: #{tpu_custom_call.1} parent=1 // pred_fallthru
      _
    // Predicated region
    $region34: #{tpu_custom_call.1} parent=1 // pred_check
      _
    $region35: #{tpu_custom_call.1} parent=1 // pred_check_branch
      %318 = sbr.rel (0) target = $region37
    $region36: #{tpu_custom_call.1} parent=1 // pred_region
      %319 = dma.done [#allocation3], 128
    $region37: #{tpu_custom_call.1} parent=1 // pred_fallthru
      _
    %320 = vsyncpa [#allocation3], 1

</llo_original>
